<compile_context>
chip_gen: v7x
topology: tpu7x:2x2x1
jax: 0.10.0
libtpu: 0.0.40
codegen_flags: <defaults>
</compile_context>

<pallas_src>
import functools

import jax
import jax.numpy as jnp
from jax.experimental import pallas as pl
from jax.experimental.pallas import tpu as pltpu

VOCAB = 128            # synthetic vocab size (lane-aligned)
HIDDEN = 128           # hidden size (lane-aligned)
TARGET_ROW_TILE = 2048 # rows (= flattened tokens) per grid step at steady state
MIN_ROW_TILE = 256     # floor; multiple of 256 tiles cleanly on 2x256^2 and 4x128^2 MXUs


def _pick_row_tile(n_rows):
    """Largest tile <= TARGET that still leaves >= 2 grid steps when possible.

    Halving from 2048 keeps every candidate a multiple of 256 (v6e/v7x 2x256^2 MXU,
    v5e 4x128^2 MXU).  >= 2 steps keeps v7x's two TensorCores busy on the "parallel"
    axis and lets the pipeline hide the first DMA / last writeback.
    """
    tile = TARGET_ROW_TILE
    while tile > MIN_ROW_TILE and pl.cdiv(n_rows, tile) < 2:
        tile //= 2
    return max(tile, MIN_ROW_TILE)


def _embedder_kernel(tok_ref, ewb_ref, o_ref):
    # tok_ref: (row_tile, 1)   int32   token ids for this row tile
    # ewb_ref: (VOCAB, HIDDEN) bf16    folded table  EW+b = E @ W + b  (resident every step)
    # o_ref  : (row_tile, HIDDEN) f32  last_hidden_state rows
    tok = tok_ref[...]                                               # (r, 1) int32
    r = tok.shape[0]

    # Embedding gather + projection + bias as ONE one-hot @ (E@W + b) matmul on the MXU
    # (each one-hot row sums to exactly 1, so the bias fold is exact up to bf16 rounding).
    vocab_ids = jax.lax.broadcasted_iota(jnp.int32, (r, VOCAB), 1)   # (r, V)
    onehot = (vocab_ids == tok).astype(jnp.bfloat16)                 # exact in bf16
    h = jnp.dot(onehot, ewb_ref[...],
                preferred_element_type=jnp.float32)                  # (r, H) f32 acc

    # One-pass LayerNorm over the hidden dim (no affine), all in f32:
    # a single read of h feeds both lane reductions, then one scale-and-shift pass.
    inv_h = jnp.float32(1.0 / HIDDEN)
    mu = jnp.sum(h, axis=-1, keepdims=True) * inv_h
    msq = jnp.sum(h * h, axis=-1, keepdims=True) * inv_h
    var = msq - mu * mu
    o_ref[...] = ((h - mu) * jax.lax.rsqrt(var + 1e-5)).astype(o_ref.dtype)


@functools.partial(jax.jit, static_argnames=())
def embedder_forward(tokens, emb_table, w, b):
    """tokens: (B, S) int32 -> last_hidden_state: (B, S, HIDDEN) float32."""
    B, S = tokens.shape
    R = B * S
    row_tile = _pick_row_tile(R)          # shapes are static under jit -> Python int
    n_tiles = pl.cdiv(R, row_tile)
    R_pad = n_tiles * row_tile

    # Clamp token ids so out-of-range ids can't silently zero the one-hot row.
    tok_rows = jnp.clip(tokens.reshape(R).astype(jnp.int32), 0, VOCAB - 1)
    if R_pad != R:
        tok_rows = jnp.pad(tok_rows, (0, R_pad - R))   # pad rows use token id 0
    tok_rows = tok_rows.reshape(R_pad, 1)

    # Fold projection AND bias into the table once (token-independent):
    #   (onehot @ E) @ W + b == onehot @ (E @ W + b).
    # Add in f32, then cast once to bf16 for the MXU; in-kernel accumulation stays f32.
    ewb = (jnp.dot(emb_table, w, preferred_element_type=jnp.float32)
           + b.reshape(1, HIDDEN).astype(jnp.float32)).astype(jnp.bfloat16)

    out = pl.pallas_call(
        _embedder_kernel,
        out_shape=jax.ShapeDtypeStruct((R_pad, HIDDEN), jnp.float32),
        grid_spec=pltpu.PrefetchScalarGridSpec(
            num_scalar_prefetch=0,
            grid=(n_tiles,),
            in_specs=[
                pl.BlockSpec((row_tile, 1), lambda i: (i, 0)),      # token ids
                pl.BlockSpec((VOCAB, HIDDEN), lambda i: (0, 0)),    # folded table (bf16)
            ],
            out_specs=pl.BlockSpec((row_tile, HIDDEN), lambda i: (i, 0)),
        ),
        compiler_params=pltpu.CompilerParams(
            dimension_semantics=("parallel",)),
    )(tok_rows, ewb)

    return out[:R].reshape(B, S, HIDDEN)


def _reference(tokens, emb_table, w, b):
    e = emb_table[tokens]                                  # (B, S, H)
    h = jnp.einsum("bsh,hk->bsk", e, w) + b[0]
    mu = jnp.mean(h, axis=-1, keepdims=True)
    var = jnp.mean((h - mu) ** 2, axis=-1, keepdims=True)
    return (h - mu) * jax.lax.rsqrt(var + 1e-5)


if __name__ == "__main__":
    key = jax.random.PRNGKey(0)
    k_tok, k_emb, k_w, k_b = jax.random.split(key, 4)

    B, S = 2, 8
    tokens = jax.random.randint(k_tok, (B, S), 0, VOCAB, dtype=jnp.int32)

    # Deterministic synthetic parameters (no checkpoint load).
    emb_table = jax.random.normal(k_emb, (VOCAB, HIDDEN), jnp.float32) * 0.02
    w = jax.random.normal(k_w, (HIDDEN, HIDDEN), jnp.float32) * 0.02
    b = jax.random.normal(k_b, (1, HIDDEN), jnp.float32) * 0.02

    last_hidden_state = embedder_forward(tokens, emb_table, w, b)
    last_hidden_state = jax.block_until_ready(last_hidden_state)

    ref = _reference(tokens, emb_table, w, b)
    assert last_hidden_state.shape == (B, S, HIDDEN)
    # bf16 MXU operands (folded table) -> slightly loosened tolerance vs. pure-f32 reference.
    assert jnp.allclose(last_hidden_state, ref, atol=2e-2, rtol=2e-2)

    print("KERNEL_OK")
</pallas_src>

<mosaic_0001>
module attributes {stable_mosaic.version = 11 : i64} {
  func.func @_embedder_kernel(%arg0: i32, %arg1: memref<256x1xi32, #tpu.memory_space<vmem>>, %arg2: memref<128x128xbf16, #tpu.memory_space<vmem>>, %arg3: memref<256x128xf32, #tpu.memory_space<vmem>>) attributes {dimension_semantics = [#tpu.dimension_semantics<parallel>], iteration_bounds = array<i64: 1>, scalar_prefetch = 0 : i64, scratch_operands = 0 : i64, tpu.core_type = #tpu.core_type<tc>, window_params = [{transform_indices = @transform_0, window_bounds = array<i64: 256, 1>}, {pipeline_mode = #tpu.pipeline_mode<synchronous>, transform_indices = @transform_1, window_bounds = array<i64: 128, 128>}, {transform_indices = @transform_2, window_bounds = array<i64: 256, 128>}]} {
    %c0 = arith.constant 0 : index
    %c0_0 = arith.constant 0 : index
    %0 = vector.load %arg1[%c0, %c0_0] : memref<256x1xi32, #tpu.memory_space<vmem>>, vector<256x1xi32>
    %1 = tpu.iota {dimensions = array<i32: 1>} : vector<256x128xi32>
    %2 = vector.broadcast %0 : vector<256x1xi32> to vector<256x128xi32>
    %3 = arith.cmpi eq, %1, %2 : vector<256x128xi32>
    %4 = arith.extui %3 : vector<256x128xi1> to vector<256x128xi32>
    %5 = arith.sitofp %4 : vector<256x128xi32> to vector<256x128xf32>
    %6 = arith.truncf %5 : vector<256x128xf32> to vector<256x128xbf16>
    %c0_1 = arith.constant 0 : index
    %c0_2 = arith.constant 0 : index
    %7 = vector.load %arg2[%c0_1, %c0_2] : memref<128x128xbf16, #tpu.memory_space<vmem>>, vector<128x128xbf16>
    %cst = arith.constant dense<0.000000e+00> : vector<256x128xf32>
    %8 = tpu.matmul %6, %7, %cst {dimension_numbers = #tpu.dot_dimension_numbers<[1], [0], [0], [1], [0, 0, 1, 1], [], []>} : vector<256x128xbf16>, vector<128x128xbf16>, vector<256x128xf32> -> vector<256x128xf32>
    %cst_3 = arith.constant dense<0.000000e+00> : vector<256xf32>
    %9 = vector.multi_reduction <add>, %8, %cst_3 [1] : vector<256x128xf32> to vector<256xf32>
    %10 = vector.shape_cast %9 : vector<256xf32> to vector<256x1xf32>
    %cst_4 = arith.constant 7.812500e-03 : f32
    %11 = vector.broadcast %cst_4 : f32 to vector<256x1xf32>
    %12 = arith.mulf %10, %11 : vector<256x1xf32>
    %13 = arith.mulf %8, %8 : vector<256x128xf32>
    %cst_5 = arith.constant dense<0.000000e+00> : vector<256xf32>
    %14 = vector.multi_reduction <add>, %13, %cst_5 [1] : vector<256x128xf32> to vector<256xf32>
    %15 = vector.shape_cast %14 : vector<256xf32> to vector<256x1xf32>
    %cst_6 = arith.constant 7.812500e-03 : f32
    %16 = vector.broadcast %cst_6 : f32 to vector<256x1xf32>
    %17 = arith.mulf %15, %16 : vector<256x1xf32>
    %18 = arith.mulf %12, %12 : vector<256x1xf32>
    %19 = arith.subf %17, %18 : vector<256x1xf32>
    %20 = vector.broadcast %12 : vector<256x1xf32> to vector<256x128xf32>
    %21 = arith.subf %8, %20 : vector<256x128xf32>
    %cst_7 = arith.constant 9.99999974E-6 : f32
    %22 = vector.broadcast %cst_7 : f32 to vector<256x1xf32>
    %23 = arith.addf %19, %22 : vector<256x1xf32>
    %24 = math.rsqrt %23 : vector<256x1xf32>
    %25 = vector.broadcast %24 : vector<256x1xf32> to vector<256x128xf32>
    %26 = arith.mulf %21, %25 : vector<256x128xf32>
    %c0_8 = arith.constant 0 : index
    %c0_9 = arith.constant 0 : index
    %27 = vector.load %arg3[%c0_8, %c0_9] : memref<256x128xf32, #tpu.memory_space<vmem>>, vector<256x128xf32>
    tpu.vector_store %arg3[%c0_8, %c0_9], %26 {strides = array<i32>} : memref<256x128xf32, #tpu.memory_space<vmem>>, vector<256x128xf32>,
    return
  }
  func.func @transform_0(%arg0: i32) -> (i32, i32) {
    %c0_i32 = arith.constant 0 : i32
    %c0_i32_0 = arith.constant 0 : i32
    return %arg0, %c0_i32 : i32, i32
  }
  func.func @transform_1(%arg0: i32) -> (i32, i32) {
    %c0_i32 = arith.constant 0 : i32
    %c0_i32_0 = arith.constant 0 : i32
    %c0_i32_1 = arith.constant 0 : i32
    return %c0_i32, %c0_i32_0 : i32, i32
  }
  func.func @transform_2(%arg0: i32) -> (i32, i32) {
    %c0_i32 = arith.constant 0 : i32
    %c0_i32_0 = arith.constant 0 : i32
    return %arg0, %c0_i32 : i32, i32
  }
}

</mosaic_0001>

<llo_original>
// kernel: embedder_forward.1
$region0: #{embedder_forward.1}
  #allocation0 [shape = 'u32[]', space=smem, size = 0x4, offset = 0x4, fixed_abs, tag = 'smem constant byte address 0x4 - core index']
  #allocation1 [shape = 'u32[144,128]{1,0:T(1,128)}', space=vmem, size = 0x12000, scoped, tag = 'internal scratch']
  %s0 = inlined_call_operand.vmem [shape: s32[256,1], index: 0, kind: input, shape index: {}]
  %s1 = inlined_call_operand.vmem [shape: bf16[128,128], index: 1, kind: input, shape index: {}]
  %s2 = inlined_call_operand.vmem [shape: f32[256,128], index: 2, kind: output, shape index: {}]
  %s3 = sld [smem:[#allocation0]]
  $region18: #{embedder_forward.1} parent=0
    _
  %s5 = ssub.s32 1, %s3
  %s6 = scalar_select 0, %s5, %s3
  // Predicated region
  $region2: #{embedder_forward.1} parent=0 // pred_check
    _
  $region3: #{embedder_forward.1} parent=0 // pred_check_branch
    %8 = sbr.rel (0) target = $region5
  $region4: #{embedder_forward.1} parent=0 // pred_region
    _
  $region5: #{embedder_forward.1} parent=0 // pred_fallthru
    _
  // Predicated region
  $region6: #{embedder_forward.1} parent=0 // pred_check
    _
  $region7: #{embedder_forward.1} parent=0 // pred_check_branch
    %10 = sbr.rel (0) target = $region9
  $region8: #{embedder_forward.1} parent=0 // pred_region
    _
  $region9: #{embedder_forward.1} parent=0 // pred_fallthru
    _
  %v12 = vld [vmem:[%s0] sm:$0xff]
  %v13 = vld [vmem:[%s0 + $0x8] sm:$0xff]
  %v14 = vld [vmem:[%s0 + $0x10] sm:$0xff]
  %v15 = vld [vmem:[%s0 + $0x18] sm:$0xff]
  %v16 = vld [vmem:[%s0 + $0x20] sm:$0xff]
  %v17 = vld [vmem:[%s0 + $0x28] sm:$0xff]
  %v18 = vld [vmem:[%s0 + $0x30] sm:$0xff]
  %v19 = vld [vmem:[%s0 + $0x38] sm:$0xff]
  %v20 = vld [vmem:[%s0 + $0x40] sm:$0xff]
  %v21 = vld [vmem:[%s0 + $0x48] sm:$0xff]
  %v22 = vld [vmem:[%s0 + $0x50] sm:$0xff]
  %v23 = vld [vmem:[%s0 + $0x58] sm:$0xff]
  %v24 = vld [vmem:[%s0 + $0x60] sm:$0xff]
  %v25 = vld [vmem:[%s0 + $0x68] sm:$0xff]
  %v26 = vld [vmem:[%s0 + $0x70] sm:$0xff]
  %v27 = vld [vmem:[%s0 + $0x78] sm:$0xff]
  %v28 = vld [vmem:[%s0 + $0x80] sm:$0xff]
  %v29 = vld [vmem:[%s0 + $0x88] sm:$0xff]
  %v30 = vld [vmem:[%s0 + $0x90] sm:$0xff]
  %v31 = vld [vmem:[%s0 + $0x98] sm:$0xff]
  %v32 = vld [vmem:[%s0 + $0xa0] sm:$0xff]
  %v33 = vld [vmem:[%s0 + $0xa8] sm:$0xff]
  %v34 = vld [vmem:[%s0 + $0xb0] sm:$0xff]
  %v35 = vld [vmem:[%s0 + $0xb8] sm:$0xff]
  %v36 = vld [vmem:[%s0 + $0xc0] sm:$0xff]
  %v37 = vld [vmem:[%s0 + $0xc8] sm:$0xff]
  %v38 = vld [vmem:[%s0 + $0xd0] sm:$0xff]
  %v39 = vld [vmem:[%s0 + $0xd8] sm:$0xff]
  %v40 = vld [vmem:[%s0 + $0xe0] sm:$0xff]
  %v41 = vld [vmem:[%s0 + $0xe8] sm:$0xff]
  %v42 = vld [vmem:[%s0 + $0xf0] sm:$0xff]
  %v43 = vld [vmem:[%s0 + $0xf8] sm:$0xff]
  %v44 = vlaneseq
  %v45 = vand.u32 %v44, 127
  %46 = vset.pattern.permute.xlu0 0
  %47 = vperm.xlu0 %46, %v12
  %v48 = vpop.permute.xlu0 %47
  %49 = vset.pattern.permute.xlu0 0
  %50 = vperm.xlu0 %49, %v13
  %v51 = vpop.permute.xlu0 %50
  %52 = vset.pattern.permute.xlu0 0
  %53 = vperm.xlu0 %52, %v14
  %v54 = vpop.permute.xlu0 %53
  %55 = vset.pattern.permute.xlu0 0
  %56 = vperm.xlu0 %55, %v15
  %v57 = vpop.permute.xlu0 %56
  %58 = vset.pattern.permute.xlu0 0
  %59 = vperm.xlu0 %58, %v16
  %v60 = vpop.permute.xlu0 %59
  %61 = vset.pattern.permute.xlu0 0
  %62 = vperm.xlu0 %61, %v17
  %v63 = vpop.permute.xlu0 %62
  %64 = vset.pattern.permute.xlu0 0
  %65 = vperm.xlu0 %64, %v18
  %v66 = vpop.permute.xlu0 %65
  %67 = vset.pattern.permute.xlu0 0
  %68 = vperm.xlu0 %67, %v19
  %v69 = vpop.permute.xlu0 %68
  %70 = vset.pattern.permute.xlu0 0
  %71 = vperm.xlu0 %70, %v20
  %v72 = vpop.permute.xlu0 %71
  %73 = vset.pattern.permute.xlu0 0
  %74 = vperm.xlu0 %73, %v21
  %v75 = vpop.permute.xlu0 %74
  %76 = vset.pattern.permute.xlu0 0
  %77 = vperm.xlu0 %76, %v22
  %v78 = vpop.permute.xlu0 %77
  %79 = vset.pattern.permute.xlu0 0
  %80 = vperm.xlu0 %79, %v23
  %v81 = vpop.permute.xlu0 %80
  %82 = vset.pattern.permute.xlu0 0
  %83 = vperm.xlu0 %82, %v24
  %v84 = vpop.permute.xlu0 %83
  %85 = vset.pattern.permute.xlu0 0
  %86 = vperm.xlu0 %85, %v25
  %v87 = vpop.permute.xlu0 %86
  %88 = vset.pattern.permute.xlu0 0
  %89 = vperm.xlu0 %88, %v26
  %v90 = vpop.permute.xlu0 %89
  %91 = vset.pattern.permute.xlu0 0
  %92 = vperm.xlu0 %91, %v27
  %v93 = vpop.permute.xlu0 %92
  %94 = vset.pattern.permute.xlu0 0
  %95 = vperm.xlu0 %94, %v28
  %v96 = vpop.permute.xlu0 %95
  %97 = vset.pattern.permute.xlu0 0
  %98 = vperm.xlu0 %97, %v29
  %v99 = vpop.permute.xlu0 %98
  %100 = vset.pattern.permute.xlu0 0
  %101 = vperm.xlu0 %100, %v30
  %v102 = vpop.permute.xlu0 %101
  %103 = vset.pattern.permute.xlu0 0
  %104 = vperm.xlu0 %103, %v31
  %v105 = vpop.permute.xlu0 %104
  %106 = vset.pattern.permute.xlu0 0
  %107 = vperm.xlu0 %106, %v32
  %v108 = vpop.permute.xlu0 %107
  %109 = vset.pattern.permute.xlu0 0
  %110 = vperm.xlu0 %109, %v33
  %v111 = vpop.permute.xlu0 %110
  %112 = vset.pattern.permute.xlu0 0
  %113 = vperm.xlu0 %112, %v34
  %v114 = vpop.permute.xlu0 %113
  %115 = vset.pattern.permute.xlu0 0
  %116 = vperm.xlu0 %115, %v35
  %v117 = vpop.permute.xlu0 %116
  %118 = vset.pattern.permute.xlu0 0
  %119 = vperm.xlu0 %118, %v36
  %v120 = vpop.permute.xlu0 %119
  %121 = vset.pattern.permute.xlu0 0
  %122 = vperm.xlu0 %121, %v37
  %v123 = vpop.permute.xlu0 %122
  %124 = vset.pattern.permute.xlu0 0
  %125 = vperm.xlu0 %124, %v38
  %v126 = vpop.permute.xlu0 %125
  %127 = vset.pattern.permute.xlu0 0
  %128 = vperm.xlu0 %127, %v39
  %v129 = vpop.permute.xlu0 %128
  %130 = vset.pattern.permute.xlu0 0
  %131 = vperm.xlu0 %130, %v40
  %v132 = vpop.permute.xlu0 %131
  %133 = vset.pattern.permute.xlu0 0
  %134 = vperm.xlu0 %133, %v41
  %v135 = vpop.permute.xlu0 %134
  %136 = vset.pattern.permute.xlu0 0
  %137 = vperm.xlu0 %136, %v42
  %v138 = vpop.permute.xlu0 %137
  %139 = vset.pattern.permute.xlu0 0
  %140 = vperm.xlu0 %139, %v43
  %v141 = vpop.permute.xlu0 %140
  %vm142 = vcmp.eq.s32.totalorder %v45, %v48
  %vm143 = vcmp.eq.s32.totalorder %v45, %v51
  %vm144 = vcmp.eq.s32.totalorder %v45, %v54
  %vm145 = vcmp.eq.s32.totalorder %v45, %v57
  %vm146 = vcmp.eq.s32.totalorder %v45, %v60
  %vm147 = vcmp.eq.s32.totalorder %v45, %v63
  %vm148 = vcmp.eq.s32.totalorder %v45, %v66
  %vm149 = vcmp.eq.s32.totalorder %v45, %v69
  %vm150 = vcmp.eq.s32.totalorder %v45, %v72
  %vm151 = vcmp.eq.s32.totalorder %v45, %v75
  %vm152 = vcmp.eq.s32.totalorder %v45, %v78
  %vm153 = vcmp.eq.s32.totalorder %v45, %v81
  %vm154 = vcmp.eq.s32.totalorder %v45, %v84
  %vm155 = vcmp.eq.s32.totalorder %v45, %v87
  %vm156 = vcmp.eq.s32.totalorder %v45, %v90
  %vm157 = vcmp.eq.s32.totalorder %v45, %v93
  %vm158 = vcmp.eq.s32.totalorder %v45, %v96
  %vm159 = vcmp.eq.s32.totalorder %v45, %v99
  %vm160 = vcmp.eq.s32.totalorder %v45, %v102
  %vm161 = vcmp.eq.s32.totalorder %v45, %v105
  %vm162 = vcmp.eq.s32.totalorder %v45, %v108
  %vm163 = vcmp.eq.s32.totalorder %v45, %v111
  %vm164 = vcmp.eq.s32.totalorder %v45, %v114
  %vm165 = vcmp.eq.s32.totalorder %v45, %v117
  %vm166 = vcmp.eq.s32.totalorder %v45, %v120
  %vm167 = vcmp.eq.s32.totalorder %v45, %v123
  %vm168 = vcmp.eq.s32.totalorder %v45, %v126
  %vm169 = vcmp.eq.s32.totalorder %v45, %v129
  %vm170 = vcmp.eq.s32.totalorder %v45, %v132
  %vm171 = vcmp.eq.s32.totalorder %v45, %v135
  %vm172 = vcmp.eq.s32.totalorder %v45, %v138
  %vm173 = vcmp.eq.s32.totalorder %v45, %v141
  %v174 = vsel %vm142, 1, 0
  %v175 = vsel %vm143, 1, 0
  %v176 = vsel %vm144, 1, 0
  %v177 = vsel %vm145, 1, 0
  %v178 = vsel %vm146, 1, 0
  %v179 = vsel %vm147, 1, 0
  %v180 = vsel %vm148, 1, 0
  %v181 = vsel %vm149, 1, 0
  %v182 = vsel %vm150, 1, 0
  %v183 = vsel %vm151, 1, 0
  %v184 = vsel %vm152, 1, 0
  %v185 = vsel %vm153, 1, 0
  %v186 = vsel %vm154, 1, 0
  %v187 = vsel %vm155, 1, 0
  %v188 = vsel %vm156, 1, 0
  %v189 = vsel %vm157, 1, 0
  %v190 = vsel %vm158, 1, 0
  %v191 = vsel %vm159, 1, 0
  %v192 = vsel %vm160, 1, 0
  %v193 = vsel %vm161, 1, 0
  %v194 = vsel %vm162, 1, 0
  %v195 = vsel %vm163, 1, 0
  %v196 = vsel %vm164, 1, 0
  %v197 = vsel %vm165, 1, 0
  %v198 = vsel %vm166, 1, 0
  %v199 = vsel %vm167, 1, 0
  %v200 = vsel %vm168, 1, 0
  %v201 = vsel %vm169, 1, 0
  %v202 = vsel %vm170, 1, 0
  %v203 = vsel %vm171, 1, 0
  %v204 = vsel %vm172, 1, 0
  %v205 = vsel %vm173, 1, 0
  %v206 = vcvt.s32.f32 %v174
  %v207 = vcvt.s32.f32 %v175
  %v208 = vcvt.s32.f32 %v176
  %v209 = vcvt.s32.f32 %v177
  %v210 = vcvt.s32.f32 %v178
  %v211 = vcvt.s32.f32 %v179
  %v212 = vcvt.s32.f32 %v180
  %v213 = vcvt.s32.f32 %v181
  %v214 = vcvt.s32.f32 %v182
  %v215 = vcvt.s32.f32 %v183
  %v216 = vcvt.s32.f32 %v184
  %v217 = vcvt.s32.f32 %v185
  %v218 = vcvt.s32.f32 %v186
  %v219 = vcvt.s32.f32 %v187
  %v220 = vcvt.s32.f32 %v188
  %v221 = vcvt.s32.f32 %v189
  %v222 = vcvt.s32.f32 %v190
  %v223 = vcvt.s32.f32 %v191
  %v224 = vcvt.s32.f32 %v192
  %v225 = vcvt.s32.f32 %v193
  %v226 = vcvt.s32.f32 %v194
  %v227 = vcvt.s32.f32 %v195
  %v228 = vcvt.s32.f32 %v196
  %v229 = vcvt.s32.f32 %v197
  %v230 = vcvt.s32.f32 %v198
  %v231 = vcvt.s32.f32 %v199
  %v232 = vcvt.s32.f32 %v200
  %v233 = vcvt.s32.f32 %v201
  %v234 = vcvt.s32.f32 %v202
  %v235 = vcvt.s32.f32 %v203
  %v236 = vcvt.s32.f32 %v204
  %v237 = vcvt.s32.f32 %v205
  %v238 = vpack.c.bf16 %v207, %v206
  %v239 = vpack.c.bf16 %v209, %v208
  %v240 = vpack.c.bf16 %v211, %v210
  %v241 = vpack.c.bf16 %v213, %v212
  %v242 = vpack.c.bf16 %v215, %v214
  %v243 = vpack.c.bf16 %v217, %v216
  %v244 = vpack.c.bf16 %v219, %v218
  %v245 = vpack.c.bf16 %v221, %v220
  %v246 = vpack.c.bf16 %v223, %v222
  %v247 = vpack.c.bf16 %v225, %v224
  %v248 = vpack.c.bf16 %v227, %v226
  %v249 = vpack.c.bf16 %v229, %v228
  %v250 = vpack.c.bf16 %v231, %v230
  %v251 = vpack.c.bf16 %v233, %v232
  %v252 = vpack.c.bf16 %v235, %v234
  %v253 = vpack.c.bf16 %v237, %v236
  %v254 = vld [vmem:[%s1] sm:$0xf]
  %v255 = vld [vmem:[%s1 + $0x4] sm:$0xf]
  %v256 = vld [vmem:[%s1 + $0x8] sm:$0xf]
  %v257 = vld [vmem:[%s1 + $0xc] sm:$0xf]
  %v258 = vld [vmem:[%s1 + $0x10] sm:$0xf]
  %v259 = vld [vmem:[%s1 + $0x14] sm:$0xf]
  %v260 = vld [vmem:[%s1 + $0x18] sm:$0xf]
  %v261 = vld [vmem:[%s1 + $0x1c] sm:$0xf]
  %v262 = vld [vmem:[%s1 + $0x20] sm:$0xf]
  %v263 = vld [vmem:[%s1 + $0x24] sm:$0xf]
  %v264 = vld [vmem:[%s1 + $0x28] sm:$0xf]
  %v265 = vld [vmem:[%s1 + $0x2c] sm:$0xf]
  %v266 = vld [vmem:[%s1 + $0x30] sm:$0xf]
  %v267 = vld [vmem:[%s1 + $0x34] sm:$0xf]
  %v268 = vld [vmem:[%s1 + $0x38] sm:$0xf]
  %v269 = vld [vmem:[%s1 + $0x3c] sm:$0xf]
  %v286 = vunpack.c.l.b16 %v254
  %v287 = vunpack.c.l.b16 %v255
  %v288 = vunpack.c.l.b16 %v256
  %v289 = vunpack.c.l.b16 %v257
  %v290 = vunpack.c.l.b16 %v258
  %v291 = vunpack.c.l.b16 %v259
  %v292 = vunpack.c.l.b16 %v260
  %v293 = vunpack.c.l.b16 %v261
  %v294 = vunpack.c.l.b16 %v262
  %v295 = vunpack.c.l.b16 %v263
  %v296 = vunpack.c.l.b16 %v264
  %v297 = vunpack.c.l.b16 %v265
  %v298 = vunpack.c.l.b16 %v266
  %v299 = vunpack.c.l.b16 %v267
  %v300 = vunpack.c.l.b16 %v268
  %v301 = vunpack.c.l.b16 %v269
  %v302 = vpack.c.b16 %v287, %v286
  %v303 = vpack.c.b16 %v289, %v288
  %v304 = vpack.c.b16 %v291, %v290
  %v305 = vpack.c.b16 %v293, %v292
  %v306 = vpack.c.b16 %v295, %v294
  %v307 = vpack.c.b16 %v297, %v296
  %v308 = vpack.c.b16 %v299, %v298
  %v309 = vpack.c.b16 %v301, %v300
  %318 = vmatprep.subr.bf16.mxu0 0
  %319 = vmatpush1.bf16.msra.mxu0 %v302
  %320 = vmatprep.subr.bf16.mxu0 0
  %321 = vmatpush1.bf16.msra.mxu0 %v303
  %322 = vmatprep.subr.bf16.mxu0 0
  %323 = vmatpush1.bf16.msra.mxu0 %v304
  %324 = vmatprep.subr.bf16.mxu0 0
  %325 = vmatpush1.bf16.msra.mxu0 %v305
  %326 = vmatprep.subr.bf16.mxu0 0
  %327 = vmatpush1.bf16.msra.mxu0 %v306
  %328 = vmatprep.subr.bf16.mxu0 0
  %329 = vmatpush1.bf16.msra.mxu0 %v307
  %330 = vmatprep.subr.bf16.mxu0 0
  %331 = vmatpush1.bf16.msra.mxu0 %v308
  %332 = vmatprep.subr.bf16.mxu0 0
  %333 = vmatpush1.bf16.msra.mxu0 %v309
  %334 = vmatprep.subr.bf16.mxu0 0
  %335 = vmatpush1.bf16.msra.mxu0 0
  %336 = vmatprep.subr.bf16.mxu0 0
  %337 = vmatpush1.bf16.msra.mxu0 0
  %338 = vmatprep.subr.bf16.mxu0 0
  %339 = vmatpush1.bf16.msra.mxu0 0
  %340 = vmatprep.subr.bf16.mxu0 0
  %341 = vmatpush1.bf16.msra.mxu0 0
  %342 = vmatprep.subr.bf16.mxu0 0
  %343 = vmatpush1.bf16.msra.mxu0 0
  %344 = vmatprep.subr.bf16.mxu0 0
  %345 = vmatpush1.bf16.msra.mxu0 0
  %346 = vmatprep.subr.bf16.mxu0 0
  %347 = vmatpush1.bf16.msra.mxu0 0
  %348 = vmatprep.subr.bf16.mxu0 0
  %349 = vmatpush1.bf16.msra.mxu0 0
  %350 = vmatprep.mubr.bf16.mxu0 0
  %351 = vmatmul.mubr.bf16.gmra.mrb[0].mxu0 %v238
  %v352 = vpop.f32.mrb[0].mxu0
  %v353 = vadd.f32 0.0, %v352
  %v354 = vpop.f32.mrb[0].mxu0
  %v355 = vpop.f32.mrb[0].mxu0
  %v356 = vadd.f32 0.0, %v355
  %v357 = vpop.f32.mrb[0].mxu0
  %358 = vmatprep.mubr.bf16.mxu0 0
  %359 = vmatmul.mubr.bf16.gmra.mrb[0].mxu0 %v239
  %v360 = vpop.f32.mrb[0].mxu0
  %v361 = vadd.f32 0.0, %v360
  %v362 = vpop.f32.mrb[0].mxu0
  %v363 = vpop.f32.mrb[0].mxu0
  %v364 = vadd.f32 0.0, %v363
  %v365 = vpop.f32.mrb[0].mxu0
  %366 = vmatprep.mubr.bf16.mxu0 0
  %367 = vmatmul.mubr.bf16.gmra.mrb[0].mxu0 %v240
  %v368 = vpop.f32.mrb[0].mxu0
  %v369 = vadd.f32 0.0, %v368
  %v370 = vpop.f32.mrb[0].mxu0
  %v371 = vpop.f32.mrb[0].mxu0
  %v372 = vadd.f32 0.0, %v371
  %v373 = vpop.f32.mrb[0].mxu0
  %374 = vmatprep.mubr.bf16.mxu0 0
  %375 = vmatmul.mubr.bf16.gmra.mrb[0].mxu0 %v241
  %v376 = vpop.f32.mrb[0].mxu0
  %v377 = vadd.f32 0.0, %v376
  %v378 = vpop.f32.mrb[0].mxu0
  %v379 = vpop.f32.mrb[0].mxu0
  %v380 = vadd.f32 0.0, %v379
  %v381 = vpop.f32.mrb[0].mxu0
  %382 = vmatprep.mubr.bf16.mxu0 0
  %383 = vmatmul.mubr.bf16.gmra.mrb[0].mxu0 %v242
  %v384 = vpop.f32.mrb[0].mxu0
  %v385 = vadd.f32 0.0, %v384
  %v386 = vpop.f32.mrb[0].mxu0
  %v387 = vpop.f32.mrb[0].mxu0
  %v388 = vadd.f32 0.0, %v387
  %v389 = vpop.f32.mrb[0].mxu0
  %390 = vmatprep.mubr.bf16.mxu0 0
  %391 = vmatmul.mubr.bf16.gmra.mrb[0].mxu0 %v243
  %v392 = vpop.f32.mrb[0].mxu0
  %v393 = vadd.f32 0.0, %v392
  %v394 = vpop.f32.mrb[0].mxu0
  %v395 = vpop.f32.mrb[0].mxu0
  %v396 = vadd.f32 0.0, %v395
  %v397 = vpop.f32.mrb[0].mxu0
  %398 = vmatprep.mubr.bf16.mxu0 0
  %399 = vmatmul.mubr.bf16.gmra.mrb[0].mxu0 %v244
  %v400 = vpop.f32.mrb[0].mxu0
  %v401 = vadd.f32 0.0, %v400
  %v402 = vpop.f32.mrb[0].mxu0
  %v403 = vpop.f32.mrb[0].mxu0
  %v404 = vadd.f32 0.0, %v403
  %v405 = vpop.f32.mrb[0].mxu0
  %406 = vmatprep.mubr.bf16.mxu0 0
  %407 = vmatmul.mubr.bf16.gmra.mrb[0].mxu0 %v245
  %v408 = vpop.f32.mrb[0].mxu0
  %v409 = vadd.f32 0.0, %v408
  %v410 = vpop.f32.mrb[0].mxu0
  %v411 = vpop.f32.mrb[0].mxu0
  %v412 = vadd.f32 0.0, %v411
  %v413 = vpop.f32.mrb[0].mxu0
  %414 = vmatprep.mubr.bf16.mxu0 0
  %415 = vmatmul.mubr.bf16.gmra.mrb[0].mxu0 %v246
  %v416 = vpop.f32.mrb[0].mxu0
  %v417 = vadd.f32 0.0, %v416
  %v418 = vpop.f32.mrb[0].mxu0
  %v419 = vpop.f32.mrb[0].mxu0
  %v420 = vadd.f32 0.0, %v419
  %v421 = vpop.f32.mrb[0].mxu0
  %422 = vmatprep.mubr.bf16.mxu0 0
  %423 = vmatmul.mubr.bf16.gmra.mrb[0].mxu0 %v247
  %v424 = vpop.f32.mrb[0].mxu0
  %v425 = vadd.f32 0.0, %v424
  %v426 = vpop.f32.mrb[0].mxu0
  %v427 = vpop.f32.mrb[0].mxu0
  %v428 = vadd.f32 0.0, %v427
  %v429 = vpop.f32.mrb[0].mxu0
  %430 = vmatprep.mubr.bf16.mxu0 0
  %431 = vmatmul.mubr.bf16.gmra.mrb[0].mxu0 %v248
  %v432 = vpop.f32.mrb[0].mxu0
  %v433 = vadd.f32 0.0, %v432
  %v434 = vpop.f32.mrb[0].mxu0
  %v435 = vpop.f32.mrb[0].mxu0
  %v436 = vadd.f32 0.0, %v435
  %v437 = vpop.f32.mrb[0].mxu0
  %438 = vmatprep.mubr.bf16.mxu0 0
  %439 = vmatmul.mubr.bf16.gmra.mrb[0].mxu0 %v249
  %v440 = vpop.f32.mrb[0].mxu0
  %v441 = vadd.f32 0.0, %v440
  %v442 = vpop.f32.mrb[0].mxu0
  %v443 = vpop.f32.mrb[0].mxu0
  %v444 = vadd.f32 0.0, %v443
  %v445 = vpop.f32.mrb[0].mxu0
  %446 = vmatprep.mubr.bf16.mxu0 0
  %447 = vmatmul.mubr.bf16.gmra.mrb[0].mxu0 %v250
  %v448 = vpop.f32.mrb[0].mxu0
  %v449 = vadd.f32 0.0, %v448
  %v450 = vpop.f32.mrb[0].mxu0
  %v451 = vpop.f32.mrb[0].mxu0
  %v452 = vadd.f32 0.0, %v451
  %v453 = vpop.f32.mrb[0].mxu0
  %454 = vmatprep.mubr.bf16.mxu0 0
  %455 = vmatmul.mubr.bf16.gmra.mrb[0].mxu0 %v251
  %v456 = vpop.f32.mrb[0].mxu0
  %v457 = vadd.f32 0.0, %v456
  %v458 = vpop.f32.mrb[0].mxu0
  %v459 = vpop.f32.mrb[0].mxu0
  %v460 = vadd.f32 0.0, %v459
  %v461 = vpop.f32.mrb[0].mxu0
  %462 = vmatprep.mubr.bf16.mxu0 0
  %463 = vmatmul.mubr.bf16.gmra.mrb[0].mxu0 %v252
  %v464 = vpop.f32.mrb[0].mxu0
  %v465 = vadd.f32 0.0, %v464
  %v466 = vpop.f32.mrb[0].mxu0
  %v467 = vpop.f32.mrb[0].mxu0
  %v468 = vadd.f32 0.0, %v467
  %v469 = vpop.f32.mrb[0].mxu0
  %470 = vmatprep.mubr.bf16.mxu0 0
  %471 = vmatmul.mubr.bf16.gmra.mrb[0].mxu0 %v253
  %v472 = vpop.f32.mrb[0].mxu0
  %v473 = vadd.f32 0.0, %v472
  %v474 = vpop.f32.mrb[0].mxu0
  %v475 = vpop.f32.mrb[0].mxu0
  %v476 = vadd.f32 0.0, %v475
  %v477 = vpop.f32.mrb[0].mxu0
  %478 = vdwg.mxu0
  %479 = vadd.xlane.f32.xlu0 %v353
  %v480 = vpop.xlane.xlu0 %479
  %481 = vadd.xlane.f32.xlu0 %v356
  %v482 = vpop.xlane.xlu0 %481
  %483 = vadd.xlane.f32.xlu0 %v361
  %v484 = vpop.xlane.xlu0 %483
  %485 = vadd.xlane.f32.xlu0 %v364
  %v486 = vpop.xlane.xlu0 %485
  %487 = vadd.xlane.f32.xlu0 %v369
  %v488 = vpop.xlane.xlu0 %487
  %489 = vadd.xlane.f32.xlu0 %v372
  %v490 = vpop.xlane.xlu0 %489
  %491 = vadd.xlane.f32.xlu0 %v377
  %v492 = vpop.xlane.xlu0 %491
  %493 = vadd.xlane.f32.xlu0 %v380
  %v494 = vpop.xlane.xlu0 %493
  %495 = vadd.xlane.f32.xlu0 %v385
  %v496 = vpop.xlane.xlu0 %495
  %497 = vadd.xlane.f32.xlu0 %v388
  %v498 = vpop.xlane.xlu0 %497
  %499 = vadd.xlane.f32.xlu0 %v393
  %v500 = vpop.xlane.xlu0 %499
  %501 = vadd.xlane.f32.xlu0 %v396
  %v502 = vpop.xlane.xlu0 %501
  %503 = vadd.xlane.f32.xlu0 %v401
  %v504 = vpop.xlane.xlu0 %503
  %505 = vadd.xlane.f32.xlu0 %v404
  %v506 = vpop.xlane.xlu0 %505
  %507 = vadd.xlane.f32.xlu0 %v409
  %v508 = vpop.xlane.xlu0 %507
  %509 = vadd.xlane.f32.xlu0 %v412
  %v510 = vpop.xlane.xlu0 %509
  %511 = vadd.xlane.f32.xlu0 %v417
  %v512 = vpop.xlane.xlu0 %511
  %513 = vadd.xlane.f32.xlu0 %v420
  %v514 = vpop.xlane.xlu0 %513
  %515 = vadd.xlane.f32.xlu0 %v425
  %v516 = vpop.xlane.xlu0 %515
  %517 = vadd.xlane.f32.xlu0 %v428
  %v518 = vpop.xlane.xlu0 %517
  %519 = vadd.xlane.f32.xlu0 %v433
  %v520 = vpop.xlane.xlu0 %519
  %521 = vadd.xlane.f32.xlu0 %v436
  %v522 = vpop.xlane.xlu0 %521
  %523 = vadd.xlane.f32.xlu0 %v441
  %v524 = vpop.xlane.xlu0 %523
  %525 = vadd.xlane.f32.xlu0 %v444
  %v526 = vpop.xlane.xlu0 %525
  %527 = vadd.xlane.f32.xlu0 %v449
  %v528 = vpop.xlane.xlu0 %527
  %529 = vadd.xlane.f32.xlu0 %v452
  %v530 = vpop.xlane.xlu0 %529
  %531 = vadd.xlane.f32.xlu0 %v457
  %v532 = vpop.xlane.xlu0 %531
  %533 = vadd.xlane.f32.xlu0 %v460
  %v534 = vpop.xlane.xlu0 %533
  %535 = vadd.xlane.f32.xlu0 %v465
  %v536 = vpop.xlane.xlu0 %535
  %537 = vadd.xlane.f32.xlu0 %v468
  %v538 = vpop.xlane.xlu0 %537
  %539 = vadd.xlane.f32.xlu0 %v473
  %v540 = vpop.xlane.xlu0 %539
  %541 = vadd.xlane.f32.xlu0 %v476
  %v542 = vpop.xlane.xlu0 %541
  %v543 = vmul.f32 %v480, 0.0078125
  %v544 = vmul.f32 %v482, 0.0078125
  %v545 = vmul.f32 %v484, 0.0078125
  %v546 = vmul.f32 %v486, 0.0078125
  %v547 = vmul.f32 %v488, 0.0078125
  %v548 = vmul.f32 %v490, 0.0078125
  %v549 = vmul.f32 %v492, 0.0078125
  %v550 = vmul.f32 %v494, 0.0078125
  %v551 = vmul.f32 %v496, 0.0078125
  %v552 = vmul.f32 %v498, 0.0078125
  %v553 = vmul.f32 %v500, 0.0078125
  %v554 = vmul.f32 %v502, 0.0078125
  %v555 = vmul.f32 %v504, 0.0078125
  %v556 = vmul.f32 %v506, 0.0078125
  %v557 = vmul.f32 %v508, 0.0078125
  %v558 = vmul.f32 %v510, 0.0078125
  %v559 = vmul.f32 %v512, 0.0078125
  %v560 = vmul.f32 %v514, 0.0078125
  %v561 = vmul.f32 %v516, 0.0078125
  %v562 = vmul.f32 %v518, 0.0078125
  %v563 = vmul.f32 %v520, 0.0078125
  %v564 = vmul.f32 %v522, 0.0078125
  %v565 = vmul.f32 %v524, 0.0078125
  %v566 = vmul.f32 %v526, 0.0078125
  %v567 = vmul.f32 %v528, 0.0078125
  %v568 = vmul.f32 %v530, 0.0078125
  %v569 = vmul.f32 %v532, 0.0078125
  %v570 = vmul.f32 %v534, 0.0078125
  %v571 = vmul.f32 %v536, 0.0078125
  %v572 = vmul.f32 %v538, 0.0078125
  %v573 = vmul.f32 %v540, 0.0078125
  %v574 = vmul.f32 %v542, 0.0078125
  %v575 = vmul.f32 %v353, %v353
  %v576 = vmul.f32 %v356, %v356
  %v577 = vmul.f32 %v361, %v361
  %v578 = vmul.f32 %v364, %v364
  %v579 = vmul.f32 %v369, %v369
  %v580 = vmul.f32 %v372, %v372
  %v581 = vmul.f32 %v377, %v377
  %v582 = vmul.f32 %v380, %v380
  %v583 = vmul.f32 %v385, %v385
  %v584 = vmul.f32 %v388, %v388
  %v585 = vmul.f32 %v393, %v393
  %v586 = vmul.f32 %v396, %v396
  %v587 = vmul.f32 %v401, %v401
  %v588 = vmul.f32 %v404, %v404
  %v589 = vmul.f32 %v409, %v409
  %v590 = vmul.f32 %v412, %v412
  %v591 = vmul.f32 %v417, %v417
  %v592 = vmul.f32 %v420, %v420
  %v593 = vmul.f32 %v425, %v425
  %v594 = vmul.f32 %v428, %v428
  %v595 = vmul.f32 %v433, %v433
  %v596 = vmul.f32 %v436, %v436
  %v597 = vmul.f32 %v441, %v441
  %v598 = vmul.f32 %v444, %v444
  %v599 = vmul.f32 %v449, %v449
  %v600 = vmul.f32 %v452, %v452
  %v601 = vmul.f32 %v457, %v457
  %v602 = vmul.f32 %v460, %v460
  %v603 = vmul.f32 %v465, %v465
  %v604 = vmul.f32 %v468, %v468
  %v605 = vmul.f32 %v473, %v473
  %v606 = vmul.f32 %v476, %v476
  %607 = vadd.xlane.f32.xlu0 %v575
  %v608 = vpop.xlane.xlu0 %607
  %609 = vadd.xlane.f32.xlu0 %v576
  %v610 = vpop.xlane.xlu0 %609
  %611 = vadd.xlane.f32.xlu0 %v577
  %v612 = vpop.xlane.xlu0 %611
  %613 = vadd.xlane.f32.xlu0 %v578
  %v614 = vpop.xlane.xlu0 %613
  %615 = vadd.xlane.f32.xlu0 %v579
  %v616 = vpop.xlane.xlu0 %615
  %617 = vadd.xlane.f32.xlu0 %v580
  %v618 = vpop.xlane.xlu0 %617
  %619 = vadd.xlane.f32.xlu0 %v581
  %v620 = vpop.xlane.xlu0 %619
  %621 = vadd.xlane.f32.xlu0 %v582
  %v622 = vpop.xlane.xlu0 %621
  %623 = vadd.xlane.f32.xlu0 %v583
  %v624 = vpop.xlane.xlu0 %623
  %625 = vadd.xlane.f32.xlu0 %v584
  %v626 = vpop.xlane.xlu0 %625
  %627 = vadd.xlane.f32.xlu0 %v585
  %v628 = vpop.xlane.xlu0 %627
  %629 = vadd.xlane.f32.xlu0 %v586
  %v630 = vpop.xlane.xlu0 %629
  %631 = vadd.xlane.f32.xlu0 %v587
  %v632 = vpop.xlane.xlu0 %631
  %633 = vadd.xlane.f32.xlu0 %v588
  %v634 = vpop.xlane.xlu0 %633
  %635 = vadd.xlane.f32.xlu0 %v589
  %v636 = vpop.xlane.xlu0 %635
  %637 = vadd.xlane.f32.xlu0 %v590
  %v638 = vpop.xlane.xlu0 %637
  %639 = vadd.xlane.f32.xlu0 %v591
  %v640 = vpop.xlane.xlu0 %639
  %641 = vadd.xlane.f32.xlu0 %v592
  %v642 = vpop.xlane.xlu0 %641
  %643 = vadd.xlane.f32.xlu0 %v593
  %v644 = vpop.xlane.xlu0 %643
  %645 = vadd.xlane.f32.xlu0 %v594
  %v646 = vpop.xlane.xlu0 %645
  %647 = vadd.xlane.f32.xlu0 %v595
  %v648 = vpop.xlane.xlu0 %647
  %649 = vadd.xlane.f32.xlu0 %v596
  %v650 = vpop.xlane.xlu0 %649
  %651 = vadd.xlane.f32.xlu0 %v597
  %v652 = vpop.xlane.xlu0 %651
  %653 = vadd.xlane.f32.xlu0 %v598
  %v654 = vpop.xlane.xlu0 %653
  %655 = vadd.xlane.f32.xlu0 %v599
  %v656 = vpop.xlane.xlu0 %655
  %657 = vadd.xlane.f32.xlu0 %v600
  %v658 = vpop.xlane.xlu0 %657
  %659 = vadd.xlane.f32.xlu0 %v601
  %v660 = vpop.xlane.xlu0 %659
  %661 = vadd.xlane.f32.xlu0 %v602
  %v662 = vpop.xlane.xlu0 %661
  %663 = vadd.xlane.f32.xlu0 %v603
  %v664 = vpop.xlane.xlu0 %663
  %665 = vadd.xlane.f32.xlu0 %v604
  %v666 = vpop.xlane.xlu0 %665
  %667 = vadd.xlane.f32.xlu0 %v605
  %v668 = vpop.xlane.xlu0 %667
  %669 = vadd.xlane.f32.xlu0 %v606
  %v670 = vpop.xlane.xlu0 %669
  %v671 = vmul.f32 %v608, 0.0078125
  %v672 = vmul.f32 %v610, 0.0078125
  %v673 = vmul.f32 %v612, 0.0078125
  %v674 = vmul.f32 %v614, 0.0078125
  %v675 = vmul.f32 %v616, 0.0078125
  %v676 = vmul.f32 %v618, 0.0078125
  %v677 = vmul.f32 %v620, 0.0078125
  %v678 = vmul.f32 %v622, 0.0078125
  %v679 = vmul.f32 %v624, 0.0078125
  %v680 = vmul.f32 %v626, 0.0078125
  %v681 = vmul.f32 %v628, 0.0078125
  %v682 = vmul.f32 %v630, 0.0078125
  %v683 = vmul.f32 %v632, 0.0078125
  %v684 = vmul.f32 %v634, 0.0078125
  %v685 = vmul.f32 %v636, 0.0078125
  %v686 = vmul.f32 %v638, 0.0078125
  %v687 = vmul.f32 %v640, 0.0078125
  %v688 = vmul.f32 %v642, 0.0078125
  %v689 = vmul.f32 %v644, 0.0078125
  %v690 = vmul.f32 %v646, 0.0078125
  %v691 = vmul.f32 %v648, 0.0078125
  %v692 = vmul.f32 %v650, 0.0078125
  %v693 = vmul.f32 %v652, 0.0078125
  %v694 = vmul.f32 %v654, 0.0078125
  %v695 = vmul.f32 %v656, 0.0078125
  %v696 = vmul.f32 %v658, 0.0078125
  %v697 = vmul.f32 %v660, 0.0078125
  %v698 = vmul.f32 %v662, 0.0078125
  %v699 = vmul.f32 %v664, 0.0078125
  %v700 = vmul.f32 %v666, 0.0078125
  %v701 = vmul.f32 %v668, 0.0078125
  %v702 = vmul.f32 %v670, 0.0078125
  %v703 = vmul.f32 %v543, %v543
  %v704 = vmul.f32 %v544, %v544
  %v705 = vmul.f32 %v545, %v545
  %v706 = vmul.f32 %v546, %v546
  %v707 = vmul.f32 %v547, %v547
  %v708 = vmul.f32 %v548, %v548
  %v709 = vmul.f32 %v549, %v549
  %v710 = vmul.f32 %v550, %v550
  %v711 = vmul.f32 %v551, %v551
  %v712 = vmul.f32 %v552, %v552
  %v713 = vmul.f32 %v553, %v553
  %v714 = vmul.f32 %v554, %v554
  %v715 = vmul.f32 %v555, %v555
  %v716 = vmul.f32 %v556, %v556
  %v717 = vmul.f32 %v557, %v557
  %v718 = vmul.f32 %v558, %v558
  %v719 = vmul.f32 %v559, %v559
  %v720 = vmul.f32 %v560, %v560
  %v721 = vmul.f32 %v561, %v561
  %v722 = vmul.f32 %v562, %v562
  %v723 = vmul.f32 %v563, %v563
  %v724 = vmul.f32 %v564, %v564
  %v725 = vmul.f32 %v565, %v565
  %v726 = vmul.f32 %v566, %v566
  %v727 = vmul.f32 %v567, %v567
  %v728 = vmul.f32 %v568, %v568
  %v729 = vmul.f32 %v569, %v569
  %v730 = vmul.f32 %v570, %v570
  %v731 = vmul.f32 %v571, %v571
  %v732 = vmul.f32 %v572, %v572
  %v733 = vmul.f32 %v573, %v573
  %v734 = vmul.f32 %v574, %v574
  %v735 = vsub.f32 %v671, %v703
  %v736 = vsub.f32 %v672, %v704
  %v737 = vsub.f32 %v673, %v705
  %v738 = vsub.f32 %v674, %v706
  %v739 = vsub.f32 %v675, %v707
  %v740 = vsub.f32 %v676, %v708
  %v741 = vsub.f32 %v677, %v709
  %v742 = vsub.f32 %v678, %v710
  %v743 = vsub.f32 %v679, %v711
  %v744 = vsub.f32 %v680, %v712
  %v745 = vsub.f32 %v681, %v713
  %v746 = vsub.f32 %v682, %v714
  %v747 = vsub.f32 %v683, %v715
  %v748 = vsub.f32 %v684, %v716
  %v749 = vsub.f32 %v685, %v717
  %v750 = vsub.f32 %v686, %v718
  %v751 = vsub.f32 %v687, %v719
  %v752 = vsub.f32 %v688, %v720
  %v753 = vsub.f32 %v689, %v721
  %v754 = vsub.f32 %v690, %v722
  %v755 = vsub.f32 %v691, %v723
  %v756 = vsub.f32 %v692, %v724
  %v757 = vsub.f32 %v693, %v725
  %v758 = vsub.f32 %v694, %v726
  %v759 = vsub.f32 %v695, %v727
  %v760 = vsub.f32 %v696, %v728
  %v761 = vsub.f32 %v697, %v729
  %v762 = vsub.f32 %v698, %v730
  %v763 = vsub.f32 %v699, %v731
  %v764 = vsub.f32 %v700, %v732
  %v765 = vsub.f32 %v701, %v733
  %v766 = vsub.f32 %v702, %v734
  %v767 = vsub.f32 %v353, %v543
  %v768 = vsub.f32 %v356, %v544
  %v769 = vsub.f32 %v361, %v545
  %v770 = vsub.f32 %v364, %v546
  %v771 = vsub.f32 %v369, %v547
  %v772 = vsub.f32 %v372, %v548
  %v773 = vsub.f32 %v377, %v549
  %v774 = vsub.f32 %v380, %v550
  %v775 = vsub.f32 %v385, %v551
  %v776 = vsub.f32 %v388, %v552
  %v777 = vsub.f32 %v393, %v553
  %v778 = vsub.f32 %v396, %v554
  %v779 = vsub.f32 %v401, %v555
  %v780 = vsub.f32 %v404, %v556
  %v781 = vsub.f32 %v409, %v557
  %v782 = vsub.f32 %v412, %v558
  %v783 = vsub.f32 %v417, %v559
  %v784 = vsub.f32 %v420, %v560
  %v785 = vsub.f32 %v425, %v561
  %v786 = vsub.f32 %v428, %v562
  %v787 = vsub.f32 %v433, %v563
  %v788 = vsub.f32 %v436, %v564
  %v789 = vsub.f32 %v441, %v565
  %v790 = vsub.f32 %v444, %v566
  %v791 = vsub.f32 %v449, %v567
  %v792 = vsub.f32 %v452, %v568
  %v793 = vsub.f32 %v457, %v569
  %v794 = vsub.f32 %v460, %v570
  %v795 = vsub.f32 %v465, %v571
  %v796 = vsub.f32 %v468, %v572
  %v797 = vsub.f32 %v473, %v573
  %v798 = vsub.f32 %v476, %v574
  %v799 = vadd.f32 %v735, 1e-05
  %v800 = vadd.f32 %v736, 1e-05
  %v801 = vadd.f32 %v737, 1e-05
  %v802 = vadd.f32 %v738, 1e-05
  %v803 = vadd.f32 %v739, 1e-05
  %v804 = vadd.f32 %v740, 1e-05
  %v805 = vadd.f32 %v741, 1e-05
  %v806 = vadd.f32 %v742, 1e-05
  %v807 = vadd.f32 %v743, 1e-05
  %v808 = vadd.f32 %v744, 1e-05
  %v809 = vadd.f32 %v745, 1e-05
  %v810 = vadd.f32 %v746, 1e-05
  %v811 = vadd.f32 %v747, 1e-05
  %v812 = vadd.f32 %v748, 1e-05
  %v813 = vadd.f32 %v749, 1e-05
  %v814 = vadd.f32 %v750, 1e-05
  %v815 = vadd.f32 %v751, 1e-05
  %v816 = vadd.f32 %v752, 1e-05
  %v817 = vadd.f32 %v753, 1e-05
  %v818 = vadd.f32 %v754, 1e-05
  %v819 = vadd.f32 %v755, 1e-05
  %v820 = vadd.f32 %v756, 1e-05
  %v821 = vadd.f32 %v757, 1e-05
  %v822 = vadd.f32 %v758, 1e-05
  %v823 = vadd.f32 %v759, 1e-05
  %v824 = vadd.f32 %v760, 1e-05
  %v825 = vadd.f32 %v761, 1e-05
  %v826 = vadd.f32 %v762, 1e-05
  %v827 = vadd.f32 %v763, 1e-05
  %v828 = vadd.f32 %v764, 1e-05
  %v829 = vadd.f32 %v765, 1e-05
  %v830 = vadd.f32 %v766, 1e-05
  %v831 = vrsqrt.pop %v799
  %v832 = vrsqrt.pop %v800
  %v833 = vrsqrt.pop %v801
  %v834 = vrsqrt.pop %v802
  %v835 = vrsqrt.pop %v803
  %v836 = vrsqrt.pop %v804
  %v837 = vrsqrt.pop %v805
  %v838 = vrsqrt.pop %v806
  %v839 = vrsqrt.pop %v807
  %v840 = vrsqrt.pop %v808
  %v841 = vrsqrt.pop %v809
  %v842 = vrsqrt.pop %v810
  %v843 = vrsqrt.pop %v811
  %v844 = vrsqrt.pop %v812
  %v845 = vrsqrt.pop %v813
  %v846 = vrsqrt.pop %v814
  %v847 = vrsqrt.pop %v815
  %v848 = vrsqrt.pop %v816
  %v849 = vrsqrt.pop %v817
  %v850 = vrsqrt.pop %v818
  %v851 = vrsqrt.pop %v819
  %v852 = vrsqrt.pop %v820
  %v853 = vrsqrt.pop %v821
  %v854 = vrsqrt.pop %v822
  %v855 = vrsqrt.pop %v823
  %v856 = vrsqrt.pop %v824
  %v857 = vrsqrt.pop %v825
  %v858 = vrsqrt.pop %v826
  %v859 = vrsqrt.pop %v827
  %v860 = vrsqrt.pop %v828
  %v861 = vrsqrt.pop %v829
  %v862 = vrsqrt.pop %v830
  %v863 = vmul.f32 %v767, %v831
  %v864 = vmul.f32 %v768, %v832
  %v865 = vmul.f32 %v769, %v833
  %v866 = vmul.f32 %v770, %v834
  %v867 = vmul.f32 %v771, %v835
  %v868 = vmul.f32 %v772, %v836
  %v869 = vmul.f32 %v773, %v837
  %v870 = vmul.f32 %v774, %v838
  %v871 = vmul.f32 %v775, %v839
  %v872 = vmul.f32 %v776, %v840
  %v873 = vmul.f32 %v777, %v841
  %v874 = vmul.f32 %v778, %v842
  %v875 = vmul.f32 %v779, %v843
  %v876 = vmul.f32 %v780, %v844
  %v877 = vmul.f32 %v781, %v845
  %v878 = vmul.f32 %v782, %v846
  %v879 = vmul.f32 %v783, %v847
  %v880 = vmul.f32 %v784, %v848
  %v881 = vmul.f32 %v785, %v849
  %v882 = vmul.f32 %v786, %v850
  %v883 = vmul.f32 %v787, %v851
  %v884 = vmul.f32 %v788, %v852
  %v885 = vmul.f32 %v789, %v853
  %v886 = vmul.f32 %v790, %v854
  %v887 = vmul.f32 %v791, %v855
  %v888 = vmul.f32 %v792, %v856
  %v889 = vmul.f32 %v793, %v857
  %v890 = vmul.f32 %v794, %v858
  %v891 = vmul.f32 %v795, %v859
  %v892 = vmul.f32 %v796, %v860
  %v893 = vmul.f32 %v797, %v861
  %v894 = vmul.f32 %v798, %v862
  %895 = vst [vmem:[%s2] sm:$0xff] %v863
  %896 = vst [vmem:[%s2 + $0x8] sm:$0xff] %v864
  %897 = vst [vmem:[%s2 + $0x10] sm:$0xff] %v865
  %898 = vst [vmem:[%s2 + $0x18] sm:$0xff] %v866
  %899 = vst [vmem:[%s2 + $0x20] sm:$0xff] %v867
  %900 = vst [vmem:[%s2 + $0x28] sm:$0xff] %v868
  %901 = vst [vmem:[%s2 + $0x30] sm:$0xff] %v869
  %902 = vst [vmem:[%s2 + $0x38] sm:$0xff] %v870
  %903 = vst [vmem:[%s2 + $0x40] sm:$0xff] %v871
  %904 = vst [vmem:[%s2 + $0x48] sm:$0xff] %v872
  %905 = vst [vmem:[%s2 + $0x50] sm:$0xff] %v873
  %906 = vst [vmem:[%s2 + $0x58] sm:$0xff] %v874
  %907 = vst [vmem:[%s2 + $0x60] sm:$0xff] %v875
  %908 = vst [vmem:[%s2 + $0x68] sm:$0xff] %v876
  %909 = vst [vmem:[%s2 + $0x70] sm:$0xff] %v877
  %910 = vst [vmem:[%s2 + $0x78] sm:$0xff] %v878
  %911 = vst [vmem:[%s2 + $0x80] sm:$0xff] %v879
  %912 = vst [vmem:[%s2 + $0x88] sm:$0xff] %v880
  %913 = vst [vmem:[%s2 + $0x90] sm:$0xff] %v881
  %914 = vst [vmem:[%s2 + $0x98] sm:$0xff] %v882
  %915 = vst [vmem:[%s2 + $0xa0] sm:$0xff] %v883
  %916 = vst [vmem:[%s2 + $0xa8] sm:$0xff] %v884
  %917 = vst [vmem:[%s2 + $0xb0] sm:$0xff] %v885
  %918 = vst [vmem:[%s2 + $0xb8] sm:$0xff] %v886
  %919 = vst [vmem:[%s2 + $0xc0] sm:$0xff] %v887
  %920 = vst [vmem:[%s2 + $0xc8] sm:$0xff] %v888
  %921 = vst [vmem:[%s2 + $0xd0] sm:$0xff] %v889
  %922 = vst [vmem:[%s2 + $0xd8] sm:$0xff] %v890
  %923 = vst [vmem:[%s2 + $0xe0] sm:$0xff] %v891
  %924 = vst [vmem:[%s2 + $0xe8] sm:$0xff] %v892
  %925 = vst [vmem:[%s2 + $0xf0] sm:$0xff] %v893
  %926 = vst [vmem:[%s2 + $0xf8] sm:$0xff] %v894
  // Predicated region
  $region10: #{embedder_forward.1} parent=0 // pred_check
    _
  $region11: #{embedder_forward.1} parent=0 // pred_check_branch
    %928 = sbr.rel (0) target = $region13
  $region12: #{embedder_forward.1} parent=0 // pred_region
    _
  $region13: #{embedder_forward.1} parent=0 // pred_fallthru
    _
  // Predicated region
  $region14: #{embedder_forward.1} parent=0 // pred_check
    _
  $region15: #{embedder_forward.1} parent=0 // pred_check_branch
    %930 = sbr.rel (0) target = $region17
  $region16: #{embedder_forward.1} parent=0 // pred_region
    _
  $region17: #{embedder_forward.1} parent=0 // pred_fallthru
    _

</llo_original>
